<compile_context>
chip_gen: v6e
topology: v6e:2x2x1
jax: 0.10.0
libtpu: 0.0.40
codegen_flags: <defaults>
</compile_context>

<pallas_src>
import jax
import jax.numpy as jnp
from jax.experimental import pallas as pl
from jax.experimental.pallas import tpu as pltpu


def _linear_kernel(x_ref, w_ref, b_ref, o_ref):
    """y_tile = x_tile @ W + b for one batch tile.

    x_ref: [tm, A]      (batch rows on sublanes, features on lanes)
    w_ref: [A,  E_pad]  (VMEM-resident across the grid)
    b_ref: [1,  E_pad]  (VMEM-resident across the grid)
    o_ref: [tm, E_pad]  (lane-dense: E_pad is a multiple of 128)
    """
    # Single MXU matmul with f32 accumulation. Even at A=4 this is the right
    # choice in a memory-bound kernel: it frees the VALU/XLU slots and keeps
    # compute fully hidden under the output writeback.
    acc = jnp.dot(
        x_ref[...].astype(jnp.float32),
        w_ref[...].astype(jnp.float32),
        preferred_element_type=jnp.float32,
    )
    # Fold the bias into the final store (broadcast add on the VPU).
    o_ref[...] = (acc + b_ref[...].astype(jnp.float32)).astype(o_ref.dtype)


def _round_up(x, m):
    return ((x + m - 1) // m) * m


def action_embedding(x, weight, bias, *, tm=2048):
    """Forward of torch nn.Linear(action_dim, emb_dim): y = x @ weight.T + bias.

    x:      [B, action_dim]
    weight: [emb_dim, action_dim]   (torch layout)
    bias:   [emb_dim]
    returns [B, emb_dim]  (same dtype as x)
    """
    B, A = x.shape
    E, A2 = weight.shape
    assert A == A2 and bias.shape == (E,)

    # ---- layout plumbing in the wrapper (cheap, fused by XLA) -------------
    # Kernel wants W as [A, E] and bias as a broadcastable [1, E] row.
    # Pad emb_dim to a multiple of 128 so the output stores are lane-dense.
    E_pad = _round_up(E, 128)
    w_t = weight.T                      # [A, E]
    b2 = bias.reshape(1, E)
    if E_pad != E:
        w_t = jnp.pad(w_t, ((0, 0), (0, E_pad - E)))
        b2 = jnp.pad(b2, ((0, 0), (0, E_pad - E)))

    # ---- batch tile sizing -------------------------------------------------
    tm = min(tm, B)
    if B > 8:
        # Guarantee >= 2 grid steps so "parallel" can shard across v7x's 2 TCs.
        tm = min(tm, _round_up(pl.cdiv(B, 2), 8))
    if tm < B:
        tm = max(8, (tm // 8) * 8)      # keep sublane-aligned for partial grids
    grid_m = pl.cdiv(B, tm)

    # ---- VMEM budget (only override when approaching v5e's 16 MiB default) --
    # x blocks are lane-padded to (tm, 128) in VMEM regardless of A.
    bytes_per = jnp.dtype(x.dtype).itemsize
    x_buf = tm * 128 * 4 * 2                       # f32-padded, double-buffered
    o_buf = tm * E_pad * bytes_per * 2             # double-buffered output tile
    wb_buf = (A + 1) * E_pad * 4 * 2               # resident W + bias
    est = x_buf + o_buf + wb_buf
    vmem_limit = int(min(56 << 20, 2 * est)) if est > (12 << 20) else None

    out = pl.pallas_call(
        _linear_kernel,
        out_shape=jax.ShapeDtypeStruct((B, E_pad), x.dtype),
        grid=(grid_m,),
        in_specs=[
            pl.BlockSpec((tm, A), lambda i: (i, 0)),      # x: tiled over batch
            pl.BlockSpec((A, E_pad), lambda i: (0, 0)),   # W: VMEM-resident
            pl.BlockSpec((1, E_pad), lambda i: (0, 0)),   # b: VMEM-resident
        ],
        out_specs=pl.BlockSpec((tm, E_pad), lambda i: (i, 0)),
        compiler_params=pltpu.CompilerParams(
            dimension_semantics=("parallel",),
            vmem_limit_bytes=vmem_limit,
        ),
    )(x, w_t, b2)

    if E_pad != E:
        out = out[:, :E]
    return out


def _torch_linear_ref(x, weight, bias):
    return x @ weight.T + bias


if __name__ == "__main__":
    key = jax.random.PRNGKey(0)

    # ---- main check: lane-dense emb_dim, batch big enough for a 2-step grid --
    batch, action_dim, emb_dim = 512, 4, 128
    kx, kw, kb, kx2, kw2, kb2 = jax.random.split(key, 6)

    x = jax.random.normal(kx, (batch, action_dim), dtype=jnp.float32)
    bound = 1.0 / (action_dim ** 0.5)   # mimic nn.Linear's U(-1/sqrt(fan_in), .)
    weight = jax.random.uniform(
        kw, (emb_dim, action_dim), minval=-bound, maxval=bound, dtype=jnp.float32
    )  # torch layout [out, in]
    bias = jax.random.uniform(
        kb, (emb_dim,), minval=-bound, maxval=bound, dtype=jnp.float32
    )

    y = action_embedding(x, weight, bias)            # tm=2048 -> clamped to 256, 2 grid steps
    jax.block_until_ready(y)
    y_ref = _torch_linear_ref(x, weight, bias)
    assert y.shape == (batch, emb_dim)
    assert jnp.allclose(y, y_ref, atol=1e-5, rtol=1e-5)

    # ---- secondary check: non-multiple-of-128 emb_dim exercises the pad/slice path --
    batch2, emb_dim2 = 64, 96
    x2 = jax.random.normal(kx2, (batch2, action_dim), dtype=jnp.float32)
    weight2 = jax.random.uniform(
        kw2, (emb_dim2, action_dim), minval=-bound, maxval=bound, dtype=jnp.float32
    )
    bias2 = jax.random.uniform(
        kb2, (emb_dim2,), minval=-bound, maxval=bound, dtype=jnp.float32
    )
    y2 = action_embedding(x2, weight2, bias2)
    jax.block_until_ready(y2)
    y2_ref = _torch_linear_ref(x2, weight2, bias2)
    assert y2.shape == (batch2, emb_dim2)
    assert jnp.allclose(y2, y2_ref, atol=1e-5, rtol=1e-5)

    print("KERNEL_OK")
</pallas_src>

<mosaic_0001>
module attributes {stable_mosaic.version = 11 : i64} {
  func.func @_linear_kernel(%arg0: i32, %arg1: memref<256x4xf32, #tpu.memory_space<vmem>>, %arg2: memref<4x128xf32, #tpu.memory_space<vmem>>, %arg3: memref<1x128xf32, #tpu.memory_space<vmem>>, %arg4: memref<256x128xf32, #tpu.memory_space<vmem>>) attributes {dimension_semantics = [#tpu.dimension_semantics<parallel>], iteration_bounds = array<i64: 2>, scalar_prefetch = 0 : i64, scratch_operands = 0 : i64, tpu.core_type = #tpu.core_type<tc>, window_params = [{transform_indices = @transform_0, window_bounds = array<i64: 256, 4>}, {pipeline_mode = #tpu.pipeline_mode<synchronous>, transform_indices = @transform_1, window_bounds = array<i64: 4, 128>}, {pipeline_mode = #tpu.pipeline_mode<synchronous>, transform_indices = @transform_2, window_bounds = array<i64: 1, 128>}, {transform_indices = @transform_3, window_bounds = array<i64: 256, 128>}]} {
    %c0 = arith.constant 0 : index
    %c0_0 = arith.constant 0 : index
    %0 = vector.load %arg1[%c0, %c0_0] : memref<256x4xf32, #tpu.memory_space<vmem>>, vector<256x4xf32>
    %c0_1 = arith.constant 0 : index
    %c0_2 = arith.constant 0 : index
    %1 = vector.load %arg2[%c0_1, %c0_2] : memref<4x128xf32, #tpu.memory_space<vmem>>, vector<4x128xf32>
    %cst = arith.constant dense<0.000000e+00> : vector<256x128xf32>
    %2 = tpu.matmul %0, %1, %cst {dimension_numbers = #tpu.dot_dimension_numbers<[1], [0], [0], [1], [0, 0, 1, 1], [], []>} : vector<256x4xf32>, vector<4x128xf32>, vector<256x128xf32> -> vector<256x128xf32>
    %c0_3 = arith.constant 0 : index
    %c0_4 = arith.constant 0 : index
    %3 = vector.load %arg3[%c0_3, %c0_4] : memref<1x128xf32, #tpu.memory_space<vmem>>, vector<1x128xf32>
    %4 = vector.broadcast %3 : vector<1x128xf32> to vector<256x128xf32>
    %5 = arith.addf %2, %4 : vector<256x128xf32>
    %c0_5 = arith.constant 0 : index
    %c0_6 = arith.constant 0 : index
    %6 = vector.load %arg4[%c0_5, %c0_6] : memref<256x128xf32, #tpu.memory_space<vmem>>, vector<256x128xf32>
    tpu.vector_store %arg4[%c0_5, %c0_6], %5 {strides = array<i32>} : memref<256x128xf32, #tpu.memory_space<vmem>>, vector<256x128xf32>,
    return
  }
  func.func @transform_0(%arg0: i32) -> (i32, i32) {
    %c0_i32 = arith.constant 0 : i32
    %c0_i32_0 = arith.constant 0 : i32
    return %arg0, %c0_i32 : i32, i32
  }
  func.func @transform_1(%arg0: i32) -> (i32, i32) {
    %c0_i32 = arith.constant 0 : i32
    %c0_i32_0 = arith.constant 0 : i32
    %c0_i32_1 = arith.constant 0 : i32
    return %c0_i32, %c0_i32_0 : i32, i32
  }
  func.func @transform_2(%arg0: i32) -> (i32, i32) {
    %c0_i32 = arith.constant 0 : i32
    %c0_i32_0 = arith.constant 0 : i32
    %c0_i32_1 = arith.constant 0 : i32
    return %c0_i32, %c0_i32_0 : i32, i32
  }
  func.func @transform_3(%arg0: i32) -> (i32, i32) {
    %c0_i32 = arith.constant 0 : i32
    %c0_i32_0 = arith.constant 0 : i32
    return %arg0, %c0_i32 : i32, i32
  }
}

</mosaic_0001>

<llo_original>
// kernel: tpu_custom_call.1
$region0: #{tpu_custom_call.1}
  #allocation0 [shape = 'u32[]', space=smem, size = 0x4, offset = 0x4, fixed_abs, tag = 'smem constant byte address 0x4 - core index']
  #allocation1 [shape = 'u32[144,128]{1,0:T(1,128)}', space=vmem, size = 0x12000, scoped, tag = 'internal scratch']
  %s0 = inlined_call_operand.vmem [shape: f32[512,4], index: 0, kind: input, shape index: {}]
  %s1 = inlined_call_operand.vmem [shape: f32[4,128], index: 1, kind: input, shape index: {}]
  %s2 = inlined_call_operand.vmem [shape: f32[1,128], index: 2, kind: input, shape index: {}]
  %s3 = inlined_call_operand.hbm [shape: f32[512,128], index: 3, kind: output, shape index: {}]
  %s4 = sld [smem:[#allocation0]]
  $region45: #{tpu_custom_call.1} parent=0
    _
  %s6 = ssub.s32 1, %s4
  %s7 = scalar_select 0, %s6, %s4
  $region1: #{tpu_custom_call.1} parent=0
    #allocation2 [shape = 'u8[262144]{0}', space=vmem, size = 0x40000, scoped, tag = 'output window, operand 0']
    #allocation3 [shape = 's32[2]{0}', space=sflag, size = 0x8, scoped, tag = 'scoped memory for tpu_custom_call.1']
    %8 = vsyncpa [#allocation3], 0
    %s9 = scalar_lea.sflag [#allocation3], 1
    %10 = vsyncpa %s9, 0
    loop: start=0, step=1, limit=4
    $region2: #{tpu_custom_call.1} parent=1 // loop_pre_header
      _
    $region3: #{tpu_custom_call.1} parent=1 // loop_header
      %s12 = sphi 0, %s16
      %p13 = scmp.ge.s32.totalorder %s12, 4
      %s22 = sphi 0, %s24
      %s25 = sphi 0, %s22
      %s26 = sphi 0, %s25
      %s42 = sphi 0, %s26
      %s46 = sphi 0, %s46
      %s48 = sphi 0, %s46
      %s49 = sphi 0, %s48
      %s63 = sphi 0, %s49
      %s67 = sphi 0, %s67
      %s69 = sphi 0, %s67
      %s70 = sphi 0, %s69
      %s84 = sphi 0, %s70
      %s90 = sphi 0, %s92
      %s93 = sphi 0, %s90
      %s94 = sphi 0, %s93
      %s110 = sphi 0, %s94
    $region4: #{tpu_custom_call.1} parent=1 // loop_header_branch
      %15 = sbr.rel (%p13) target = $region8
    $region5: #{tpu_custom_call.1} parent=1 // loop_body
      %s17 = ssub.s32 %s12, 1
      %s18 = ssub.s32 %s12, 2
      %s19 = sadd.s32 %s12, 1
      %s20 = ssub.s32 %s12, %s19
      %p21 = scmp.eq.s32.totalorder %s20, 0
      %s23 = sadd.s32 %s22, 1
      %s24 = scalar_select %p21, %s22, %s23
      %p27 = pneg %p21
      %p28 = scmp.eq.s32.totalorder %s12, 1
      %p29 = por %p27, %p28
      %p30 = scmp.ne.s32.totalorder %s22, %s25
      %p31 = scmp.eq.s32.totalorder %s12, 0
      %p32 = por %p30, %p31
      %p33 = scmp.ne.s32.totalorder %s22, %s25
      %p34 = scmp.eq.s32.totalorder %s17, 1
      %p35 = por %p33, %p34
      %p36 = scmp.ne.s32.totalorder %s25, %s26
      %p37 = scmp.eq.s32.totalorder %s17, 0
      %p38 = por %p36, %p37
      %p39 = scmp.ne.s32.totalorder %s25, %s26
      %p40 = scmp.eq.s32.totalorder %s18, 1
      %p41 = por %p39, %p40
      %p43 = scmp.ne.s32.totalorder %s26, %s42
      %p44 = scmp.eq.s32.totalorder %s18, 0
      %p45 = por %p43, %p44
      %s47 = sadd.s32 %s46, 1
      %p50 = scmp.eq.s32.totalorder %s12, 1
      %p51 = scmp.ne.s32.totalorder %s46, %s48
      %p52 = scmp.eq.s32.totalorder %s12, 0
      %p53 = por %p51, %p52
      %p54 = scmp.ne.s32.totalorder %s46, %s48
      %p55 = scmp.eq.s32.totalorder %s17, 1
      %p56 = por %p54, %p55
      %p57 = scmp.ne.s32.totalorder %s48, %s49
      %p58 = scmp.eq.s32.totalorder %s17, 0
      %p59 = por %p57, %p58
      %p60 = scmp.ne.s32.totalorder %s48, %s49
      %p61 = scmp.eq.s32.totalorder %s18, 1
      %p62 = por %p60, %p61
      %p64 = scmp.ne.s32.totalorder %s49, %s63
      %p65 = scmp.eq.s32.totalorder %s18, 0
      %p66 = por %p64, %p65
      %s68 = sadd.s32 %s67, 1
      %p71 = scmp.eq.s32.totalorder %s12, 1
      %p72 = scmp.ne.s32.totalorder %s67, %s69
      %p73 = scmp.eq.s32.totalorder %s12, 0
      %p74 = por %p72, %p73
      %p75 = scmp.ne.s32.totalorder %s67, %s69
      %p76 = scmp.eq.s32.totalorder %s17, 1
      %p77 = por %p75, %p76
      %p78 = scmp.ne.s32.totalorder %s69, %s70
      %p79 = scmp.eq.s32.totalorder %s17, 0
      %p80 = por %p78, %p79
      %p81 = scmp.ne.s32.totalorder %s69, %s70
      %p82 = scmp.eq.s32.totalorder %s18, 1
      %p83 = por %p81, %p82
      %p85 = scmp.ne.s32.totalorder %s70, %s84
      %p86 = scmp.eq.s32.totalorder %s18, 0
      %p87 = por %p85, %p86
      %s88 = ssub.s32 %s12, %s19
      %p89 = scmp.eq.s32.totalorder %s88, 0
      %s91 = sadd.s32 %s90, 1
      %s92 = scalar_select %p89, %s90, %s91
      %p95 = pneg %p89
      %p96 = scmp.eq.s32.totalorder %s12, 1
      %p97 = por %p95, %p96
      %p98 = scmp.ne.s32.totalorder %s90, %s93
      %p99 = scmp.eq.s32.totalorder %s12, 0
      %p100 = por %p98, %p99
      %p101 = scmp.ne.s32.totalorder %s90, %s93
      %p102 = scmp.eq.s32.totalorder %s17, 1
      %p103 = por %p101, %p102
      %p104 = scmp.ne.s32.totalorder %s93, %s94
      %p105 = scmp.eq.s32.totalorder %s17, 0
      %p106 = por %p104, %p105
      %p107 = scmp.ne.s32.totalorder %s93, %s94
      %p108 = scmp.eq.s32.totalorder %s18, 1
      %p109 = por %p107, %p108
      %p111 = scmp.ne.s32.totalorder %s94, %s110
      %p112 = scmp.eq.s32.totalorder %s18, 0
      %p113 = por %p111, %p112
      %p114 = scmp.le.s32.totalorder 1, %s12
      %p115 = scmp.lt.s32.totalorder %s12, 3
      %p116 = pnand %p114, %p115
      %p117 = pneg %p116
      // Predicated region
      $region9: #{tpu_custom_call.1} parent=5 // pred_check
        _
      $region10: #{tpu_custom_call.1} parent=5 // pred_check_branch
        %119 = sbr.rel (%p116) target = $region12
      $region11: #{tpu_custom_call.1} parent=5 // pred_region
        %s120 = ssub.s32 %s12, 1
        // Predicated region
        $region13: #{tpu_custom_call.1} parent=11 // pred_check
          %p121 = pneg %p59
        $region14: #{tpu_custom_call.1} parent=11 // pred_check_branch
          %123 = sbr.rel (%p121) target = $region16
        $region15: #{tpu_custom_call.1} parent=11 // pred_region
          _
        $region16: #{tpu_custom_call.1} parent=11 // pred_fallthru
          _
        // Predicated region
        $region17: #{tpu_custom_call.1} parent=11 // pred_check
          %p124 = pneg %p80
        $region18: #{tpu_custom_call.1} parent=11 // pred_check_branch
          %126 = sbr.rel (%p124) target = $region20
        $region19: #{tpu_custom_call.1} parent=11 // pred_region
          _
        $region20: #{tpu_custom_call.1} parent=11 // pred_fallthru
          _
      $region12: #{tpu_custom_call.1} parent=5 // pred_fallthru
        _
      %p127 = scmp.lt.s32.totalorder %s12, 2
      // Predicated region
      $region21: #{tpu_custom_call.1} parent=5 // pred_check
        %p128 = pneg %p127
      $region22: #{tpu_custom_call.1} parent=5 // pred_check_branch
        %130 = sbr.rel (%p128) target = $region24
      $region23: #{tpu_custom_call.1} parent=5 // pred_region
        // Predicated region
        $region25: #{tpu_custom_call.1} parent=23 // pred_check
          %p131 = pneg %p32
        $region26: #{tpu_custom_call.1} parent=23 // pred_check_branch
          %133 = sbr.rel (%p131) target = $region28
        $region27: #{tpu_custom_call.1} parent=23 // pred_region
          %s134 = smul.u32 32, %s12
          %p135 = scmp.lt.s32.totalorder %s134, 63
          %s136 = scalar_select %p135, %s134, 63
          %s137 = smul.addr %s136, 8
          %s138 = scalar_lea.vmem %s0, %s137
          %s139 = smul.u32 32, %s12
        $region28: #{tpu_custom_call.1} parent=23 // pred_fallthru
          _
      $region24: #{tpu_custom_call.1} parent=5 // pred_fallthru
        _
      %p140 = scmp.le.s32.totalorder 1, %s12
      %p141 = scmp.lt.s32.totalorder %s12, 3
      %p142 = pnand %p140, %p141
      %p143 = pneg %p142
      // Predicated region
      $region29: #{tpu_custom_call.1} parent=5 // pred_check
        _
      $region30: #{tpu_custom_call.1} parent=5 // pred_check_branch
        %145 = sbr.rel (%p142) target = $region32
      $region31: #{tpu_custom_call.1} parent=5 // pred_region
        %s146 = ssub.s32 %s12, 1
        %s147 = smul.u32 32, %s17
        %p148 = scmp.lt.s32.totalorder %s147, 63
        %s149 = scalar_select %p148, %s147, 63
        %s150 = smul.addr %s149, 8
        %s151 = scalar_lea.vmem %s0, %s150
        %p152 = pneg %p38
        %p153 = pneg %p35
        %p154 = pneg %p59
        %p155 = pneg %p56
        %p156 = pneg %p80
        %p157 = pneg %p77
        %p158 = pneg %p106
        %p159 = pneg %p103
        %s160 = sand.u32 %s93, 1
        %s161 = scalar_lea.sflag [#allocation3], %s160
        %s162 = sand.u32 %s93, 1
        %s163 = smul.addr %s162, 256
        %s164 = scalar_lea.vmem [#allocation2], %s163
        %s165 = smul.u32 32, %s17
        %p166 = scmp.lt.s32.totalorder %s165, 63
        %s167 = scalar_select %p166, %s165, 63
        %s168 = smul.addr %s167, 8
        %s169 = scalar_lea.vmem %s0, %s168
        %s170 = smul.u32 32, %s17
        %s171 = smul.u32 32, %s17
        %v172 = vld [vmem:[%s169] sm:$0xff]
        %v173 = vld [vmem:[%s169 + $0x8] sm:$0xff]
        %v174 = vld [vmem:[%s169 + $0x10] sm:$0xff]
        %v175 = vld [vmem:[%s169 + $0x18] sm:$0xff]
        %v176 = vld [vmem:[%s169 + $0x20] sm:$0xff]
        %v177 = vld [vmem:[%s169 + $0x28] sm:$0xff]
        %v178 = vld [vmem:[%s169 + $0x30] sm:$0xff]
        %v179 = vld [vmem:[%s169 + $0x38] sm:$0xff]
        %v180 = vld [vmem:[%s169 + $0x40] sm:$0xff]
        %v181 = vld [vmem:[%s169 + $0x48] sm:$0xff]
        %v182 = vld [vmem:[%s169 + $0x50] sm:$0xff]
        %v183 = vld [vmem:[%s169 + $0x58] sm:$0xff]
        %v184 = vld [vmem:[%s169 + $0x60] sm:$0xff]
        %v185 = vld [vmem:[%s169 + $0x68] sm:$0xff]
        %v186 = vld [vmem:[%s169 + $0x70] sm:$0xff]
        %v187 = vld [vmem:[%s169 + $0x78] sm:$0xff]
        %v188 = vld [vmem:[%s169 + $0x80] sm:$0xff]
        %v189 = vld [vmem:[%s169 + $0x88] sm:$0xff]
        %v190 = vld [vmem:[%s169 + $0x90] sm:$0xff]
        %v191 = vld [vmem:[%s169 + $0x98] sm:$0xff]
        %v192 = vld [vmem:[%s169 + $0xa0] sm:$0xff]
        %v193 = vld [vmem:[%s169 + $0xa8] sm:$0xff]
        %v194 = vld [vmem:[%s169 + $0xb0] sm:$0xff]
        %v195 = vld [vmem:[%s169 + $0xb8] sm:$0xff]
        %v196 = vld [vmem:[%s169 + $0xc0] sm:$0xff]
        %v197 = vld [vmem:[%s169 + $0xc8] sm:$0xff]
        %v198 = vld [vmem:[%s169 + $0xd0] sm:$0xff]
        %v199 = vld [vmem:[%s169 + $0xd8] sm:$0xff]
        %v200 = vld [vmem:[%s169 + $0xe0] sm:$0xff]
        %v201 = vld [vmem:[%s169 + $0xe8] sm:$0xff]
        %v202 = vld [vmem:[%s169 + $0xf0] sm:$0xff]
        %v203 = vld [vmem:[%s169 + $0xf8] sm:$0xff]
        %v204 = vld [vmem:[%s1] sm:$0xf]
        %v205 = vld [vmem:[%s2] sm:$0x1]
        %v207 = vlaneseq
        %v208 = vshrl.u32 %v207, 7
        %v209 = vsub.s32 0, %v208
        %v210 = vrot.slane %v205, %v209
        %vm212 = vcmask 31744
        %v214 = vsel %vm212, %v172, 0
        %v217 = vsel %vm212, %v173, 0
        %v220 = vsel %vm212, %v174, 0
        %v223 = vsel %vm212, %v175, 0
        %v226 = vsel %vm212, %v176, 0
        %v229 = vsel %vm212, %v177, 0
        %v232 = vsel %vm212, %v178, 0
        %v235 = vsel %vm212, %v179, 0
        %v238 = vsel %vm212, %v180, 0
        %v241 = vsel %vm212, %v181, 0
        %v244 = vsel %vm212, %v182, 0
        %v247 = vsel %vm212, %v183, 0
        %v250 = vsel %vm212, %v184, 0
        %v253 = vsel %vm212, %v185, 0
        %v256 = vsel %vm212, %v186, 0
        %v259 = vsel %vm212, %v187, 0
        %v262 = vsel %vm212, %v188, 0
        %v265 = vsel %vm212, %v189, 0
        %v268 = vsel %vm212, %v190, 0
        %v271 = vsel %vm212, %v191, 0
        %v274 = vsel %vm212, %v192, 0
        %v277 = vsel %vm212, %v193, 0
        %v280 = vsel %vm212, %v194, 0
        %v283 = vsel %vm212, %v195, 0
        %v286 = vsel %vm212, %v196, 0
        %v289 = vsel %vm212, %v197, 0
        %v292 = vsel %vm212, %v198, 0
        %v295 = vsel %vm212, %v199, 0
        %v298 = vsel %vm212, %v200, 0
        %v301 = vsel %vm212, %v201, 0
        %v304 = vsel %vm212, %v202, 0
        %v307 = vsel %vm212, %v203, 0
        %vm309 = vcmask 1043456
        %v311 = vsel %vm309, %v204, 0
        %313 = vmatprep.subr.mxu0 0.0
        %314 = vmatpush1.msra.mxu0 0.0
        %315 = vmatprep.subr.mxu0 0.0
        %316 = vmatpush1.msra.mxu0 0.0
        %317 = vmatprep.subr.mxu0 0.0
        %318 = vmatpush1.msra.mxu0 0.0
        %319 = vmatprep.subr.mxu0 0.0
        %320 = vmatpush1.msra.mxu0 0.0
        %321 = vmatprep.subr.mxu0 0.0
        %322 = vmatpush1.msra.mxu0 0.0
        %323 = vmatprep.subr.mxu0 0.0
        %324 = vmatpush1.msra.mxu0 0.0
        %325 = vmatprep.subr.mxu0 0.0
        %326 = vmatpush1.msra.mxu0 0.0
        %327 = vmatprep.subr.mxu0 0.0
        %328 = vmatpush1.msra.mxu0 0.0
        %329 = vmatprep.subr.mxu0 0.0
        %330 = vmatpush1.msra.mxu0 0.0
        %331 = vmatprep.subr.mxu0 0.0
        %332 = vmatpush1.msra.mxu0 0.0
        %333 = vmatprep.subr.mxu0 0.0
        %334 = vmatpush1.msra.mxu0 0.0
        %335 = vmatprep.subr.mxu0 0.0
        %336 = vmatpush1.msra.mxu0 0.0
        %337 = vmatprep.subr.mxu0 0.0
        %338 = vmatpush1.msra.mxu0 0.0
        %339 = vmatprep.subr.mxu0 0.0
        %340 = vmatpush1.msra.mxu0 0.0
        %341 = vmatprep.subr.mxu0 0.0
        %342 = vmatpush1.msra.mxu0 0.0
        %343 = vmatprep.subr.mxu0 0.0
        %344 = vmatpush1.msra.mxu0 %v311
        %345 = vmatprep.subr.mxu0 0.0
        %346 = vmatpush2.msra.mxu0 0.0
        %347 = vmatprep.subr.mxu0 0.0
        %348 = vmatpush2.msra.mxu0 0.0
        %349 = vmatprep.subr.mxu0 0.0
        %350 = vmatpush2.msra.mxu0 0.0
        %351 = vmatprep.subr.mxu0 0.0
        %352 = vmatpush2.msra.mxu0 0.0
        %353 = vmatprep.subr.mxu0 0.0
        %354 = vmatpush2.msra.mxu0 0.0
        %355 = vmatprep.subr.mxu0 0.0
        %356 = vmatpush2.msra.mxu0 0.0
        %357 = vmatprep.subr.mxu0 0.0
        %358 = vmatpush2.msra.mxu0 0.0
        %359 = vmatprep.subr.mxu0 0.0
        %360 = vmatpush2.msra.mxu0 0.0
        %361 = vmatprep.subr.mxu0 0.0
        %362 = vmatpush2.msra.mxu0 0.0
        %363 = vmatprep.subr.mxu0 0.0
        %364 = vmatpush2.msra.mxu0 0.0
        %365 = vmatprep.subr.mxu0 0.0
        %366 = vmatpush2.msra.mxu0 0.0
        %367 = vmatprep.subr.mxu0 0.0
        %368 = vmatpush2.msra.mxu0 0.0
        %369 = vmatprep.subr.mxu0 0.0
        %370 = vmatpush2.msra.mxu0 0.0
        %371 = vmatprep.subr.mxu0 0.0
        %372 = vmatpush2.msra.mxu0 0.0
        %373 = vmatprep.subr.mxu0 0.0
        %374 = vmatpush2.msra.mxu0 0.0
        %375 = vmatprep.subr.mxu0 0.0
        %376 = vmatpush2.msra.mxu0 0.0
        %377 = vmatprep.mubr.f32.mxu0 0.0
        %378 = vmatmul.mubr.f32.gmra.mxu0 %v214
        %v379 = vpop.f32.mrf.mxu0
        %v380 = vadd.f32 %v210, %v379
        %v381 = vpop.f32.mrf.mxu0
        %382 = vmatprep.mubr.f32.mxu0 0.0
        %383 = vmatmul.mubr.f32.gmra.mxu0 %v217
        %v384 = vpop.f32.mrf.mxu0
        %v385 = vadd.f32 %v210, %v384
        %v386 = vpop.f32.mrf.mxu0
        %387 = vmatprep.mubr.f32.mxu0 0.0
        %388 = vmatmul.mubr.f32.gmra.mxu0 %v220
        %v389 = vpop.f32.mrf.mxu0
        %v390 = vadd.f32 %v210, %v389
        %v391 = vpop.f32.mrf.mxu0
        %392 = vmatprep.mubr.f32.mxu0 0.0
        %393 = vmatmul.mubr.f32.gmra.mxu0 %v223
        %v394 = vpop.f32.mrf.mxu0
        %v395 = vadd.f32 %v210, %v394
        %v396 = vpop.f32.mrf.mxu0
        %397 = vmatprep.mubr.f32.mxu0 0.0
        %398 = vmatmul.mubr.f32.gmra.mxu0 %v226
        %v399 = vpop.f32.mrf.mxu0
        %v400 = vadd.f32 %v210, %v399
        %v401 = vpop.f32.mrf.mxu0
        %402 = vmatprep.mubr.f32.mxu0 0.0
        %403 = vmatmul.mubr.f32.gmra.mxu0 %v229
        %v404 = vpop.f32.mrf.mxu0
        %v405 = vadd.f32 %v210, %v404
        %v406 = vpop.f32.mrf.mxu0
        %407 = vmatprep.mubr.f32.mxu0 0.0
        %408 = vmatmul.mubr.f32.gmra.mxu0 %v232
        %v409 = vpop.f32.mrf.mxu0
        %v410 = vadd.f32 %v210, %v409
        %v411 = vpop.f32.mrf.mxu0
        %412 = vmatprep.mubr.f32.mxu0 0.0
        %413 = vmatmul.mubr.f32.gmra.mxu0 %v235
        %v414 = vpop.f32.mrf.mxu0
        %v415 = vadd.f32 %v210, %v414
        %v416 = vpop.f32.mrf.mxu0
        %417 = vmatprep.mubr.f32.mxu0 0.0
        %418 = vmatmul.mubr.f32.gmra.mxu0 %v238
        %v419 = vpop.f32.mrf.mxu0
        %v420 = vadd.f32 %v210, %v419
        %v421 = vpop.f32.mrf.mxu0
        %422 = vmatprep.mubr.f32.mxu0 0.0
        %423 = vmatmul.mubr.f32.gmra.mxu0 %v241
        %v424 = vpop.f32.mrf.mxu0
        %v425 = vadd.f32 %v210, %v424
        %v426 = vpop.f32.mrf.mxu0
        %427 = vmatprep.mubr.f32.mxu0 0.0
        %428 = vmatmul.mubr.f32.gmra.mxu0 %v244
        %v429 = vpop.f32.mrf.mxu0
        %v430 = vadd.f32 %v210, %v429
        %v431 = vpop.f32.mrf.mxu0
        %432 = vmatprep.mubr.f32.mxu0 0.0
        %433 = vmatmul.mubr.f32.gmra.mxu0 %v247
        %v434 = vpop.f32.mrf.mxu0
        %v435 = vadd.f32 %v210, %v434
        %v436 = vpop.f32.mrf.mxu0
        %437 = vmatprep.mubr.f32.mxu0 0.0
        %438 = vmatmul.mubr.f32.gmra.mxu0 %v250
        %v439 = vpop.f32.mrf.mxu0
        %v440 = vadd.f32 %v210, %v439
        %v441 = vpop.f32.mrf.mxu0
        %442 = vmatprep.mubr.f32.mxu0 0.0
        %443 = vmatmul.mubr.f32.gmra.mxu0 %v253
        %v444 = vpop.f32.mrf.mxu0
        %v445 = vadd.f32 %v210, %v444
        %v446 = vpop.f32.mrf.mxu0
        %447 = vmatprep.mubr.f32.mxu0 0.0
        %448 = vmatmul.mubr.f32.gmra.mxu0 %v256
        %v449 = vpop.f32.mrf.mxu0
        %v450 = vadd.f32 %v210, %v449
        %v451 = vpop.f32.mrf.mxu0
        %452 = vmatprep.mubr.f32.mxu0 0.0
        %453 = vmatmul.mubr.f32.gmra.mxu0 %v259
        %v454 = vpop.f32.mrf.mxu0
        %v455 = vadd.f32 %v210, %v454
        %v456 = vpop.f32.mrf.mxu0
        %457 = vmatprep.mubr.f32.mxu0 0.0
        %458 = vmatmul.mubr.f32.gmra.mxu0 %v262
        %v459 = vpop.f32.mrf.mxu0
        %v460 = vadd.f32 %v210, %v459
        %v461 = vpop.f32.mrf.mxu0
        %462 = vmatprep.mubr.f32.mxu0 0.0
        %463 = vmatmul.mubr.f32.gmra.mxu0 %v265
        %v464 = vpop.f32.mrf.mxu0
        %v465 = vadd.f32 %v210, %v464
        %v466 = vpop.f32.mrf.mxu0
        %467 = vmatprep.mubr.f32.mxu0 0.0
        %468 = vmatmul.mubr.f32.gmra.mxu0 %v268
        %v469 = vpop.f32.mrf.mxu0
        %v470 = vadd.f32 %v210, %v469
        %v471 = vpop.f32.mrf.mxu0
        %472 = vmatprep.mubr.f32.mxu0 0.0
        %473 = vmatmul.mubr.f32.gmra.mxu0 %v271
        %v474 = vpop.f32.mrf.mxu0
        %v475 = vadd.f32 %v210, %v474
        %v476 = vpop.f32.mrf.mxu0
        %477 = vmatprep.mubr.f32.mxu0 0.0
        %478 = vmatmul.mubr.f32.gmra.mxu0 %v274
        %v479 = vpop.f32.mrf.mxu0
        %v480 = vadd.f32 %v210, %v479
        %v481 = vpop.f32.mrf.mxu0
        %482 = vmatprep.mubr.f32.mxu0 0.0
        %483 = vmatmul.mubr.f32.gmra.mxu0 %v277
        %v484 = vpop.f32.mrf.mxu0
        %v485 = vadd.f32 %v210, %v484
        %v486 = vpop.f32.mrf.mxu0
        %487 = vmatprep.mubr.f32.mxu0 0.0
        %488 = vmatmul.mubr.f32.gmra.mxu0 %v280
        %v489 = vpop.f32.mrf.mxu0
        %v490 = vadd.f32 %v210, %v489
        %v491 = vpop.f32.mrf.mxu0
        %492 = vmatprep.mubr.f32.mxu0 0.0
        %493 = vmatmul.mubr.f32.gmra.mxu0 %v283
        %v494 = vpop.f32.mrf.mxu0
        %v495 = vadd.f32 %v210, %v494
        %v496 = vpop.f32.mrf.mxu0
        %497 = vmatprep.mubr.f32.mxu0 0.0
        %498 = vmatmul.mubr.f32.gmra.mxu0 %v286
        %v499 = vpop.f32.mrf.mxu0
        %v500 = vadd.f32 %v210, %v499
        %v501 = vpop.f32.mrf.mxu0
        %502 = vmatprep.mubr.f32.mxu0 0.0
        %503 = vmatmul.mubr.f32.gmra.mxu0 %v289
        %v504 = vpop.f32.mrf.mxu0
        %v505 = vadd.f32 %v210, %v504
        %v506 = vpop.f32.mrf.mxu0
        %507 = vmatprep.mubr.f32.mxu0 0.0
        %508 = vmatmul.mubr.f32.gmra.mxu0 %v292
        %v509 = vpop.f32.mrf.mxu0
        %v510 = vadd.f32 %v210, %v509
        %v511 = vpop.f32.mrf.mxu0
        %512 = vmatprep.mubr.f32.mxu0 0.0
        %513 = vmatmul.mubr.f32.gmra.mxu0 %v295
        %v514 = vpop.f32.mrf.mxu0
        %v515 = vadd.f32 %v210, %v514
        %v516 = vpop.f32.mrf.mxu0
        %517 = vmatprep.mubr.f32.mxu0 0.0
        %518 = vmatmul.mubr.f32.gmra.mxu0 %v298
        %v519 = vpop.f32.mrf.mxu0
        %v520 = vadd.f32 %v210, %v519
        %v521 = vpop.f32.mrf.mxu0
        %522 = vmatprep.mubr.f32.mxu0 0.0
        %523 = vmatmul.mubr.f32.gmra.mxu0 %v301
        %v524 = vpop.f32.mrf.mxu0
        %v525 = vadd.f32 %v210, %v524
        %v526 = vpop.f32.mrf.mxu0
        %527 = vmatprep.mubr.f32.mxu0 0.0
        %528 = vmatmul.mubr.f32.gmra.mxu0 %v304
        %v529 = vpop.f32.mrf.mxu0
        %v530 = vadd.f32 %v210, %v529
        %v531 = vpop.f32.mrf.mxu0
        %532 = vmatprep.mubr.f32.mxu0 0.0
        %533 = vmatmul.mubr.f32.gmra.mxu0 %v307
        %v534 = vpop.f32.mrf.mxu0
        %v535 = vadd.f32 %v210, %v534
        %v536 = vpop.f32.mrf.mxu0
        %537 = vdwg.mxu0
        %538 = vst [vmem:[%s164] sm:$0xff] %v380
        %539 = vst [vmem:[%s164 + $0x8] sm:$0xff] %v385
        %540 = vst [vmem:[%s164 + $0x10] sm:$0xff] %v390
        %541 = vst [vmem:[%s164 + $0x18] sm:$0xff] %v395
        %542 = vst [vmem:[%s164 + $0x20] sm:$0xff] %v400
        %543 = vst [vmem:[%s164 + $0x28] sm:$0xff] %v405
        %544 = vst [vmem:[%s164 + $0x30] sm:$0xff] %v410
        %545 = vst [vmem:[%s164 + $0x38] sm:$0xff] %v415
        %546 = vst [vmem:[%s164 + $0x40] sm:$0xff] %v420
        %547 = vst [vmem:[%s164 + $0x48] sm:$0xff] %v425
        %548 = vst [vmem:[%s164 + $0x50] sm:$0xff] %v430
        %549 = vst [vmem:[%s164 + $0x58] sm:$0xff] %v435
        %550 = vst [vmem:[%s164 + $0x60] sm:$0xff] %v440
        %551 = vst [vmem:[%s164 + $0x68] sm:$0xff] %v445
        %552 = vst [vmem:[%s164 + $0x70] sm:$0xff] %v450
        %553 = vst [vmem:[%s164 + $0x78] sm:$0xff] %v455
        %554 = vst [vmem:[%s164 + $0x80] sm:$0xff] %v460
        %555 = vst [vmem:[%s164 + $0x88] sm:$0xff] %v465
        %556 = vst [vmem:[%s164 + $0x90] sm:$0xff] %v470
        %557 = vst [vmem:[%s164 + $0x98] sm:$0xff] %v475
        %558 = vst [vmem:[%s164 + $0xa0] sm:$0xff] %v480
        %559 = vst [vmem:[%s164 + $0xa8] sm:$0xff] %v485
        %560 = vst [vmem:[%s164 + $0xb0] sm:$0xff] %v490
        %561 = vst [vmem:[%s164 + $0xb8] sm:$0xff] %v495
        %562 = vst [vmem:[%s164 + $0xc0] sm:$0xff] %v500
        %563 = vst [vmem:[%s164 + $0xc8] sm:$0xff] %v505
        %564 = vst [vmem:[%s164 + $0xd0] sm:$0xff] %v510
        %565 = vst [vmem:[%s164 + $0xd8] sm:$0xff] %v515
        %566 = vst [vmem:[%s164 + $0xe0] sm:$0xff] %v520
        %567 = vst [vmem:[%s164 + $0xe8] sm:$0xff] %v525
        %568 = vst [vmem:[%s164 + $0xf0] sm:$0xff] %v530
        %569 = vst [vmem:[%s164 + $0xf8] sm:$0xff] %v535
        %s570 = sand.u32 %s93, 1
        %s571 = scalar_lea.sflag [#allocation3], %s570
        %s572 = sand.u32 %s93, 1
        %s573 = smul.addr %s572, 256
        %s574 = scalar_lea.vmem [#allocation2], %s573
        // Predicated region
        $region33: #{tpu_custom_call.1} parent=31 // pred_check
          %p575 = pneg %p103
        $region34: #{tpu_custom_call.1} parent=31 // pred_check_branch
          %577 = sbr.rel (%p575) target = $region36
        $region35: #{tpu_custom_call.1} parent=31 // pred_region
          %s578 = smul.u32 32, %s17
          %s580 = ssub.s32 4096, 4096
          %581 = vsyncadd %s571, %s580
          %s582 = smul.addr %s578, 128
          %s583 = scalar_lea.hbm %s3, %s582
          %s584 = sshll.u32 %s574, 4
          %s585 = int_to_ptr.vmem [resolvable:$true] %s584
          %590 = dma.vmem_to_hbm [thread:$0]  %s585, 4096, %s583, %s571, 128, 128, 8
        $region36: #{tpu_custom_call.1} parent=31 // pred_fallthru
          _
      $region32: #{tpu_custom_call.1} parent=5 // pred_fallthru
        _
      %p591 = scmp.le.s32.totalorder 2, %s12
      // Predicated region
      $region37: #{tpu_custom_call.1} parent=5 // pred_check
        %p592 = pneg %p591
      $region38: #{tpu_custom_call.1} parent=5 // pred_check_branch
        %594 = sbr.rel (%p592) target = $region40
      $region39: #{tpu_custom_call.1} parent=5 // pred_region
        %s595 = ssub.s32 %s12, 2
        // Predicated region
        $region41: #{tpu_custom_call.1} parent=39 // pred_check
          %p596 = pneg %p109
        $region42: #{tpu_custom_call.1} parent=39 // pred_check_branch
          %598 = sbr.rel (%p596) target = $region44
        $region43: #{tpu_custom_call.1} parent=39 // pred_region
          %s599 = sand.u32 %s94, 1
          %s600 = scalar_lea.sflag [#allocation3], %s599
          %s601 = sand.u32 %s94, 1
          %s602 = smul.addr %s601, 256
          %s603 = scalar_lea.vmem [#allocation2], %s602
          %604 = dma.done %s600, 4096
        $region44: #{tpu_custom_call.1} parent=39 // pred_fallthru
          _
      $region40: #{tpu_custom_call.1} parent=5 // pred_fallthru
        _
    $region6: #{tpu_custom_call.1} parent=1 // loop_footer
      %s16 = sadd.s32 1, %s12
    $region7: #{tpu_custom_call.1} parent=1 // loop_footer_branch
      %11 = sbr.rel target = $region3
    $region8: #{tpu_custom_call.1} parent=1 // loop_exit
      _
    %605 = vsyncpa [#allocation3], 1
    %s606 = scalar_lea.sflag [#allocation3], 1
    %607 = vsyncpa %s606, 1

</llo_original>
